<compile_context>
chip_gen: v6e
topology: v6e:2x2x1
jax: 0.10.0
libtpu: 0.0.40
codegen_flags: <defaults>
</compile_context>

<pallas_src>
import jax
import jax.numpy as jnp
from jax.experimental import pallas as pl
from jax.experimental.pallas import tpu as pltpu


def _fused_kernel(x_ref, w1_ref, b1_ref, w2_ref, b2_ref, o_ref, h_ref):
    # x:  [M, H]  bf16 (resident)      w1: [H, PH] bf16 (resident)
    # b1: [1, PH] f32  (resident)      w2: [PH, TN] bf16 (streamed)
    # b2: [1, TN] f32  (streamed)      o:  [M, TN] out_dtype (streamed)
    # h:  [M, PH] bf16 VMEM scratch, persistent across grid steps (per core).
    #
    # program_id(1) == 0 is each core's first step along the sequential
    # ("arbitrary") axis, so every TensorCore computes h exactly once before
    # streaming its share of W2 tiles.  (On single-core chips it is harmlessly
    # recomputed once when the outer index advances.)
    @pl.when(pl.program_id(1) == 0)
    def _():
        acc1 = jnp.dot(x_ref[...], w1_ref[...],
                       preferred_element_type=jnp.float32)
        h_ref[...] = jnp.tanh(acc1 + b1_ref[...]).astype(h_ref.dtype)

    acc2 = jnp.dot(h_ref[...], w2_ref[...],
                   preferred_element_type=jnp.float32)
    o_ref[...] = (acc2 + b2_ref[...]).astype(o_ref.dtype)


def _choose_tile_n(out_dim_pad, target=2048):
    """Pick the layer-2 output tile width.

    out_dim_pad is a multiple of 128 by construction.  We pick the largest
    divisor of out_dim_pad that is a multiple of 128, <= target, preferring
    (a) an even (or single) tile count so v7x's two TensorCores get equal work,
    and (b) a multiple of 256 to fill the 2x256 MXU.  Because candidates are
    capped at `target`, we never request a full-out_dim (VMEM-OOM) block.
    """
    cap = min(target, out_dim_pad)
    candidates = [t for t in range(128, cap + 1, 128) if out_dim_pad % t == 0]
    if not candidates:           # unreachable: 128 always divides out_dim_pad
        return 128

    def score(t):
        n = out_dim_pad // t
        return ((n % 2 == 0) or n == 1, t % 256 == 0, t)

    return max(candidates, key=score)


def init_prefix_encoder_params(key, prefix_projection, pre_seq_len, hidden_size,
                               num_hidden_layers, prefix_hidden_size,
                               dtype=jnp.float32):
    """Deterministic synthetic master parameters (shapes match the torch module)."""
    out_dim = num_hidden_layers * 2 * hidden_size
    ks = jax.random.split(key, 5)
    if prefix_projection:
        return {
            "embedding": jax.random.normal(ks[0], (pre_seq_len, hidden_size), dtype) * 0.02,
            # Stored as (in_dim, out_dim): transposed vs torch Linear's (out, in),
            # so the kernel computes x @ W + b with identical semantics.
            "w1": jax.random.normal(ks[1], (hidden_size, prefix_hidden_size), dtype) * 0.02,
            "b1": jax.random.normal(ks[2], (1, prefix_hidden_size), dtype) * 0.02,
            "w2": jax.random.normal(ks[3], (prefix_hidden_size, out_dim), dtype) * 0.02,
            "b2": jax.random.normal(ks[4], (1, out_dim), dtype) * 0.02,
        }
    else:
        return {
            "embedding": jax.random.normal(ks[0], (pre_seq_len, out_dim), dtype) * 0.02,
        }


def prepare_prefix_encoder_params(params, prefix_projection,
                                  compute_dtype=jnp.bfloat16):
    """One-time weight staging, hoisted out of the forward hot path.

    Casts the matmul operands to bf16 (halves the W2 HBM stream, which is the
    bandwidth bottleneck) and pads out_dim up to a multiple of 128 so the
    kernel always gets lane-dense, evenly divisible column tiles.
    Biases stay f32 (added to the f32 accumulator).
    """
    if not prefix_projection:
        return {"embedding": params["embedding"]}

    out_dim = params["w2"].shape[1]
    out_dim_pad = ((out_dim + 127) // 128) * 128
    w2 = params["w2"].astype(compute_dtype)
    b2 = params["b2"].astype(jnp.float32)
    if out_dim_pad != out_dim:
        w2 = jnp.pad(w2, ((0, 0), (0, out_dim_pad - out_dim)))
        b2 = jnp.pad(b2, ((0, 0), (0, out_dim_pad - out_dim)))
    return {
        "embedding": params["embedding"].astype(compute_dtype),
        "w1": params["w1"].astype(compute_dtype),
        "b1": params["b1"].astype(jnp.float32),
        "w2": w2,
        "b2": b2,
    }


def prefix_encoder_forward(prefix, prepared, prefix_projection,
                           num_hidden_layers, hidden_size,
                           compute_dtype=jnp.bfloat16, out_dtype=None):
    """prefix: int32 [B, S] token ids into the (staged) embedding table."""
    if not prefix_projection:
        # Pure embedding gather -- no matmul hot path; done in JAX glue.
        return jnp.take(prepared["embedding"], prefix, axis=0)

    out_dtype = compute_dtype if out_dtype is None else out_dtype

    # Embedding lookup (gather) in JAX glue (table already staged in bf16).
    emb = jnp.take(prepared["embedding"], prefix, axis=0)   # [B, S, H]
    B, S, H = emb.shape

    w1, b1 = prepared["w1"], prepared["b1"]                  # [H, PH], [1, PH]
    w2, b2 = prepared["w2"], prepared["b2"]                  # [PH, Opad], [1, Opad]
    PH = w1.shape[1]
    out_dim_pad = w2.shape[1]
    out_dim = num_hidden_layers * 2 * hidden_size

    # Pad M to a multiple of 16 (bf16 native (16,128) tile) -> unmasked stores.
    M = B * S
    M_pad = ((M + 15) // 16) * 16
    x = emb.reshape(M, H)
    if x.dtype != compute_dtype:
        x = x.astype(compute_dtype)
    if M_pad != M:
        x = jnp.pad(x, ((0, M_pad - M), (0, 0)))

    TN = _choose_tile_n(out_dim_pad, target=2048)
    n_tiles = out_dim_pad // TN
    n_outer = 2 if (n_tiles >= 2 and n_tiles % 2 == 0) else 1
    n_inner = n_tiles // n_outer

    def col(c, j):                       # column block index of the output tile
        return (0, c * n_inner + j)

    cost = pl.CostEstimate(
        flops=int(2 * M_pad * H * PH + 2 * M_pad * PH * out_dim_pad),
        transcendentals=int(M_pad * PH),
        bytes_accessed=int(
            M_pad * H * 2 + H * PH * 2 + PH * 4          # x, w1, b1
            + PH * out_dim_pad * 2 + out_dim_pad * 4     # w2, b2
            + M_pad * out_dim_pad * jnp.dtype(out_dtype).itemsize),
    )

    out = pl.pallas_call(
        _fused_kernel,
        out_shape=jax.ShapeDtypeStruct((M_pad, out_dim_pad), out_dtype),
        grid=(n_outer, n_inner),
        in_specs=[
            pl.BlockSpec((M_pad, H), lambda c, j: (0, 0)),   # resident activation
            pl.BlockSpec((H, PH), lambda c, j: (0, 0)),      # resident W1
            pl.BlockSpec((1, PH), lambda c, j: (0, 0)),      # resident b1
            pl.BlockSpec((PH, TN), col),                     # streamed W2 tile
            pl.BlockSpec((1, TN), col),                      # streamed b2 tile
        ],
        out_specs=pl.BlockSpec((M_pad, TN), col),
        scratch_shapes=[pltpu.VMEM((M_pad, PH), compute_dtype)],  # h = tanh(xW1+b1)
        compiler_params=pltpu.CompilerParams(
            dimension_semantics=("parallel", "arbitrary")),  # outer axis -> 2 TCs on v7x
        cost_estimate=cost,
    )(x, w1, b1, w2, b2)

    return out[:M, :out_dim].reshape(B, S, out_dim)          # [B, S, L*2*H]


if __name__ == "__main__":
    # Small config consistent with the module's constructor.
    prefix_projection = True
    batch = 2
    pre_seq_len = 8
    hidden_size = 32
    num_hidden_layers = 2
    prefix_hidden_size = 64
    out_dim = num_hidden_layers * 2 * hidden_size            # 128

    key = jax.random.PRNGKey(0)
    params = init_prefix_encoder_params(
        key, prefix_projection, pre_seq_len, hidden_size,
        num_hidden_layers, prefix_hidden_size)

    # One-time staging (bf16 cast + column padding) -- NOT in the hot path.
    prepared = prepare_prefix_encoder_params(params, prefix_projection)

    # prefix: token ids [B, pre_seq_len] -- typically arange broadcast per batch.
    prefix = jnp.tile(jnp.arange(pre_seq_len, dtype=jnp.int32)[None, :], (batch, 1))

    fwd = jax.jit(lambda p, w: prefix_encoder_forward(
        p, w, prefix_projection, num_hidden_layers, hidden_size))
    past_key_values = fwd(prefix, prepared)
    jax.block_until_ready(past_key_values)

    # Reference with identical mixed precision: bf16 operands, f32 accumulate,
    # f32 bias/tanh, post-tanh activation rounded to bf16 (kernel output is bf16).
    emb = jnp.take(params["embedding"], prefix, axis=0)
    xf = emb.reshape(batch * pre_seq_len, hidden_size).astype(jnp.bfloat16).astype(jnp.float32)
    w1f = params["w1"].astype(jnp.bfloat16).astype(jnp.float32)
    w2f = params["w2"].astype(jnp.bfloat16).astype(jnp.float32)
    h_f32 = jnp.tanh(jnp.dot(xf, w1f, precision=jax.lax.Precision.HIGHEST) + params["b1"])
    hf = h_f32.astype(jnp.bfloat16).astype(jnp.float32)
    ref = jnp.dot(hf, w2f, precision=jax.lax.Precision.HIGHEST) + params["b2"]
    ref = ref.reshape(batch, pre_seq_len, out_dim)

    assert past_key_values.shape == (batch, pre_seq_len, out_dim), past_key_values.shape
    max_err = float(jnp.max(jnp.abs(past_key_values.astype(jnp.float32) - ref)))
    assert max_err < 2e-3, max_err

    print("KERNEL_OK")
</pallas_src>

<mosaic_0001>
module attributes {stable_mosaic.version = 11 : i64} {
  func.func @_fused_kernel(%arg0: i32, %arg1: i32, %arg2: memref<16x32xbf16, #tpu.memory_space<vmem>>, %arg3: memref<32x64xbf16, #tpu.memory_space<vmem>>, %arg4: memref<1x64xf32, #tpu.memory_space<vmem>>, %arg5: memref<64x128xbf16, #tpu.memory_space<vmem>>, %arg6: memref<1x128xf32, #tpu.memory_space<vmem>>, %arg7: memref<16x128xbf16, #tpu.memory_space<vmem>>, %arg8: memref<16x64xbf16, #tpu.memory_space<vmem>>) attributes {dimension_semantics = [#tpu.dimension_semantics<parallel>, #tpu.dimension_semantics<arbitrary>], iteration_bounds = array<i64: 1, 1>, scalar_prefetch = 0 : i64, scratch_operands = 1 : i64, tpu.core_type = #tpu.core_type<tc>, window_params = [{pipeline_mode = #tpu.pipeline_mode<synchronous>, transform_indices = @transform_0, window_bounds = array<i64: 16, 32>}, {pipeline_mode = #tpu.pipeline_mode<synchronous>, transform_indices = @transform_1, window_bounds = array<i64: 32, 64>}, {pipeline_mode = #tpu.pipeline_mode<synchronous>, transform_indices = @transform_2, window_bounds = array<i64: 1, 64>}, {transform_indices = @transform_3, window_bounds = array<i64: 64, 128>}, {transform_indices = @transform_4, window_bounds = array<i64: 1, 128>}, {transform_indices = @transform_5, window_bounds = array<i64: 16, 128>}]} {
    %c0_i32 = arith.constant 0 : i32
    %0 = arith.cmpi eq, %arg1, %c0_i32 : i32
    %1 = arith.extui %0 : i1 to i32
    %c0_i32_0 = arith.constant 0 : i32
    %2 = arith.cmpi ne, %1, %c0_i32_0 : i32
    scf.if %2 {
      %c0_8 = arith.constant 0 : index
      %c0_9 = arith.constant 0 : index
      %11 = vector.load %arg2[%c0_8, %c0_9] : memref<16x32xbf16, #tpu.memory_space<vmem>>, vector<16x32xbf16>
      %c0_10 = arith.constant 0 : index
      %c0_11 = arith.constant 0 : index
      %12 = vector.load %arg3[%c0_10, %c0_11] : memref<32x64xbf16, #tpu.memory_space<vmem>>, vector<32x64xbf16>
      %cst_12 = arith.constant dense<0.000000e+00> : vector<16x64xf32>
      %13 = tpu.matmul %11, %12, %cst_12 {dimension_numbers = #tpu.dot_dimension_numbers<[1], [0], [0], [1], [0, 0, 1, 1], [], []>} : vector<16x32xbf16>, vector<32x64xbf16>, vector<16x64xf32> -> vector<16x64xf32>
      %c0_13 = arith.constant 0 : index
      %c0_14 = arith.constant 0 : index
      %14 = vector.load %arg4[%c0_13, %c0_14] : memref<1x64xf32, #tpu.memory_space<vmem>>, vector<1x64xf32>
      %15 = vector.broadcast %14 : vector<1x64xf32> to vector<16x64xf32>
      %16 = arith.addf %13, %15 : vector<16x64xf32>
      %17 = math.tanh %16 : vector<16x64xf32>
      %18 = arith.truncf %17 : vector<16x64xf32> to vector<16x64xbf16>
      %c0_15 = arith.constant 0 : index
      %c0_16 = arith.constant 0 : index
      %19 = vector.load %arg8[%c0_15, %c0_16] : memref<16x64xbf16, #tpu.memory_space<vmem>>, vector<16x64xbf16>
      tpu.vector_store %arg8[%c0_15, %c0_16], %18 {strides = array<i32>} : memref<16x64xbf16, #tpu.memory_space<vmem>>, vector<16x64xbf16>,
    } else {
    }
    %c0 = arith.constant 0 : index
    %c0_1 = arith.constant 0 : index
    %3 = vector.load %arg8[%c0, %c0_1] : memref<16x64xbf16, #tpu.memory_space<vmem>>, vector<16x64xbf16>
    %c0_2 = arith.constant 0 : index
    %c0_3 = arith.constant 0 : index
    %4 = vector.load %arg5[%c0_2, %c0_3] : memref<64x128xbf16, #tpu.memory_space<vmem>>, vector<64x128xbf16>
    %cst = arith.constant dense<0.000000e+00> : vector<16x128xf32>
    %5 = tpu.matmul %3, %4, %cst {dimension_numbers = #tpu.dot_dimension_numbers<[1], [0], [0], [1], [0, 0, 1, 1], [], []>} : vector<16x64xbf16>, vector<64x128xbf16>, vector<16x128xf32> -> vector<16x128xf32>
    %c0_4 = arith.constant 0 : index
    %c0_5 = arith.constant 0 : index
    %6 = vector.load %arg6[%c0_4, %c0_5] : memref<1x128xf32, #tpu.memory_space<vmem>>, vector<1x128xf32>
    %7 = vector.broadcast %6 : vector<1x128xf32> to vector<16x128xf32>
    %8 = arith.addf %5, %7 : vector<16x128xf32>
    %9 = arith.truncf %8 : vector<16x128xf32> to vector<16x128xbf16>
    %c0_6 = arith.constant 0 : index
    %c0_7 = arith.constant 0 : index
    %10 = vector.load %arg7[%c0_6, %c0_7] : memref<16x128xbf16, #tpu.memory_space<vmem>>, vector<16x128xbf16>
    tpu.vector_store %arg7[%c0_6, %c0_7], %9 {strides = array<i32>} : memref<16x128xbf16, #tpu.memory_space<vmem>>, vector<16x128xbf16>,
    return
  }
  func.func @transform_0(%arg0: i32, %arg1: i32) -> (i32, i32) {
    %c0_i32 = arith.constant 0 : i32
    %c0_i32_0 = arith.constant 0 : i32
    %c0_i32_1 = arith.constant 0 : i32
    return %c0_i32, %c0_i32_0 : i32, i32
  }
  func.func @transform_1(%arg0: i32, %arg1: i32) -> (i32, i32) {
    %c0_i32 = arith.constant 0 : i32
    %c0_i32_0 = arith.constant 0 : i32
    %c0_i32_1 = arith.constant 0 : i32
    return %c0_i32, %c0_i32_0 : i32, i32
  }
  func.func @transform_2(%arg0: i32, %arg1: i32) -> (i32, i32) {
    %c0_i32 = arith.constant 0 : i32
    %c0_i32_0 = arith.constant 0 : i32
    %c0_i32_1 = arith.constant 0 : i32
    return %c0_i32, %c0_i32_0 : i32, i32
  }
  func.func @transform_3(%arg0: i32, %arg1: i32) -> (i32, i32) {
    %c1_i32 = arith.constant 1 : i32
    %0 = arith.muli %arg0, %c1_i32 : i32
    %1 = arith.addi %0, %arg1 : i32
    %c0_i32 = arith.constant 0 : i32
    %c0_i32_0 = arith.constant 0 : i32
    return %c0_i32, %1 : i32, i32
  }
  func.func @transform_4(%arg0: i32, %arg1: i32) -> (i32, i32) {
    %c1_i32 = arith.constant 1 : i32
    %0 = arith.muli %arg0, %c1_i32 : i32
    %1 = arith.addi %0, %arg1 : i32
    %c0_i32 = arith.constant 0 : i32
    %c0_i32_0 = arith.constant 0 : i32
    return %c0_i32, %1 : i32, i32
  }
  func.func @transform_5(%arg0: i32, %arg1: i32) -> (i32, i32) {
    %c1_i32 = arith.constant 1 : i32
    %0 = arith.muli %arg0, %c1_i32 : i32
    %1 = arith.addi %0, %arg1 : i32
    %c0_i32 = arith.constant 0 : i32
    %c0_i32_0 = arith.constant 0 : i32
    return %c0_i32, %1 : i32, i32
  }
}

</mosaic_0001>

<llo_original>
// kernel: _lambda_.1
$region0: #{_lambda_.1}
  #allocation0 [shape = 'u32[]', space=smem, size = 0x4, offset = 0x4, fixed_abs, tag = 'smem constant byte address 0x4 - core index']
  #allocation1 [shape = 'u32[144,128]{1,0:T(1,128)}', space=vmem, size = 0x12000, scoped, tag = 'internal scratch']
  #allocation2 [shape = 'bf16[16,64]{1,0:T(8,128)(2,1)}', space=vmem, size = 0x1000, scoped, tag = 'scratch operand']
  %s0 = inlined_call_operand.vmem [shape: bf16[16,32], index: 0, kind: input, shape index: {}]
  %s1 = inlined_call_operand.vmem [shape: bf16[32,64], index: 1, kind: input, shape index: {}]
  %s2 = inlined_call_operand.vmem [shape: f32[1,64], index: 2, kind: input, shape index: {}]
  %s3 = inlined_call_operand.vmem [shape: bf16[64,128], index: 3, kind: input, shape index: {}]
  %s4 = inlined_call_operand.vmem [shape: f32[1,128], index: 4, kind: input, shape index: {}]
  %s5 = inlined_call_operand.hbm [shape: bf16[16,128], index: 5, kind: output, shape index: {}]
  %s6 = sld [smem:[#allocation0]]
  $region34: #{_lambda_.1} parent=0
    _
  %s8 = ssub.s32 1, %s6
  %s9 = scalar_select 0, %s8, %s6
  $region1: #{_lambda_.1} parent=0
    #allocation3 [shape = 'u8[4096]{0}', space=vmem, size = 0x1000, scoped, tag = 'output window, operand 0, single buffered']
    #allocation4 [shape = 's32[1]{0}', space=sflag, size = 0x4, scoped, tag = 'scoped memory for _lambda_.1']
    %10 = vsyncpa [#allocation4], 0
    // Predicated region
    $region2: #{_lambda_.1} parent=1 // pred_check
      _
    $region3: #{_lambda_.1} parent=1 // pred_check_branch
      %12 = sbr.rel (0) target = $region5
    $region4: #{_lambda_.1} parent=1 // pred_region
      _
    $region5: #{_lambda_.1} parent=1 // pred_fallthru
      _
    // Predicated region
    $region6: #{_lambda_.1} parent=1 // pred_check
      _
    $region7: #{_lambda_.1} parent=1 // pred_check_branch
      %14 = sbr.rel (0) target = $region9
    $region8: #{_lambda_.1} parent=1 // pred_region
      _
    $region9: #{_lambda_.1} parent=1 // pred_fallthru
      _
    // Predicated region
    $region10: #{_lambda_.1} parent=1 // pred_check
      _
    $region11: #{_lambda_.1} parent=1 // pred_check_branch
      %16 = sbr.rel (0) target = $region13
    $region12: #{_lambda_.1} parent=1 // pred_region
      _
    $region13: #{_lambda_.1} parent=1 // pred_fallthru
      _
    // Predicated region
    $region14: #{_lambda_.1} parent=1 // pred_check
      _
    $region15: #{_lambda_.1} parent=1 // pred_check_branch
      %18 = sbr.rel (0) target = $region17
    $region16: #{_lambda_.1} parent=1 // pred_region
      %s19 = sadd.s32 0, 0
      %p20 = scmp.lt.s32.totalorder %s19, 0
      %s21 = scalar_select %p20, %s19, 0
      %s22 = smul.addr %s21, 4
      %s23 = scalar_lea.vmem %s3, %s22
      %s24 = sadd.s32 0, 0
    $region17: #{_lambda_.1} parent=1 // pred_fallthru
      _
    // Predicated region
    $region18: #{_lambda_.1} parent=1 // pred_check
      _
    $region19: #{_lambda_.1} parent=1 // pred_check_branch
      %26 = sbr.rel (0) target = $region21
    $region20: #{_lambda_.1} parent=1 // pred_region
      %s27 = sadd.s32 0, 0
      %p28 = scmp.lt.s32.totalorder %s27, 0
      %s29 = scalar_select %p28, %s27, 0
      %s30 = scalar_lea.vmem %s4, %s29
      %s31 = sadd.s32 0, 0
    $region21: #{_lambda_.1} parent=1 // pred_fallthru
      _
    %s32 = sadd.s32 0, 0
    %p33 = scmp.lt.s32.totalorder %s32, 0
    %s34 = scalar_select %p33, %s32, 0
    %s35 = smul.addr %s34, 4
    %s36 = scalar_lea.vmem %s3, %s35
    %s37 = sadd.s32 0, 0
    %p38 = scmp.lt.s32.totalorder %s37, 0
    %s39 = scalar_select %p38, %s37, 0
    %s40 = scalar_lea.vmem %s4, %s39
    %s41 = sadd.s32 0, 0
    %p42 = scmp.lt.s32.totalorder %s41, 0
    %s43 = scalar_select %p42, %s41, 0
    %s44 = smul.addr %s43, 4
    %s45 = scalar_lea.vmem %s3, %s44
    %s46 = sadd.s32 0, 0
    %s47 = sadd.s32 0, 0
    %p48 = scmp.lt.s32.totalorder %s47, 0
    %s49 = scalar_select %p48, %s47, 0
    %s50 = scalar_lea.vmem %s4, %s49
    %s51 = sadd.s32 0, 0
    %s52 = sadd.s32 0, 0
    %p54 = scmp.eq.s32.totalorder 0, 0
    // Predicated region
    $region22: #{_lambda_.1} parent=1 // pred_check
      %p55 = pneg %p54
    $region23: #{_lambda_.1} parent=1 // pred_check_branch
      %57 = sbr.rel (%p55) target = $region25
    $region24: #{_lambda_.1} parent=1 // pred_region
      %v58 = vld [vmem:[%s0] sm:$0xf]
      %v59 = vld [vmem:[%s0 + $0x4] sm:$0xf]
      %v60 = vld [vmem:[%s1] sm:$0xf]
      %v61 = vld [vmem:[%s1 + $0x4] sm:$0xf]
      %v62 = vld [vmem:[%s1 + $0x8] sm:$0xf]
      %v63 = vld [vmem:[%s1 + $0xc] sm:$0xf]
      %v64 = vld [vmem:[%s2] sm:$0x1]
      %v66 = vlaneseq
      %v67 = vshrl.u32 %v66, 7
      %v68 = vsub.s32 0, %v67
      %v69 = vrot.slane %v64, %v68
      %v73 = vunpack.c.l.b16 %v58
      %v74 = vunpack.c.l.b16 %v59
      %v75 = vpack.c.b16 %v74, %v73
      %v80 = vunpack.c.l.b16 %v60
      %v81 = vunpack.c.l.b16 %v61
      %v82 = vunpack.c.l.b16 %v62
      %v83 = vunpack.c.l.b16 %v63
      %v84 = vpack.c.b16 %v81, %v80
      %v85 = vpack.c.b16 %v83, %v82
      %vm88 = vcmask 261120
      %v90 = vsel %vm88, %v75, 0
      %92 = vmatprep.subr.bf16.mxu0 0
      %93 = vmatpush1.bf16.msra.mxu0 0
      %94 = vmatprep.subr.bf16.mxu0 0
      %95 = vmatpush1.bf16.msra.mxu0 0
      %96 = vmatprep.subr.bf16.mxu0 0
      %97 = vmatpush1.bf16.msra.mxu0 0
      %98 = vmatprep.subr.bf16.mxu0 0
      %99 = vmatpush1.bf16.msra.mxu0 0
      %100 = vmatprep.subr.bf16.mxu0 0
      %101 = vmatpush1.bf16.msra.mxu0 0
      %102 = vmatprep.subr.bf16.mxu0 0
      %103 = vmatpush1.bf16.msra.mxu0 0
      %104 = vmatprep.subr.bf16.mxu0 0
      %105 = vmatpush1.bf16.msra.mxu0 %v85
      %106 = vmatprep.subr.bf16.mxu0 0
      %107 = vmatpush1.bf16.msra.mxu0 %v84
      %108 = vmatprep.subr.bf16.mxu0 0
      %109 = vmatpush2.bf16.msra.mxu0 0
      %110 = vmatprep.subr.bf16.mxu0 0
      %111 = vmatpush2.bf16.msra.mxu0 0
      %112 = vmatprep.subr.bf16.mxu0 0
      %113 = vmatpush2.bf16.msra.mxu0 0
      %114 = vmatprep.subr.bf16.mxu0 0
      %115 = vmatpush2.bf16.msra.mxu0 0
      %116 = vmatprep.subr.bf16.mxu0 0
      %117 = vmatpush2.bf16.msra.mxu0 0
      %118 = vmatprep.subr.bf16.mxu0 0
      %119 = vmatpush2.bf16.msra.mxu0 0
      %120 = vmatprep.subr.bf16.mxu0 0
      %121 = vmatpush2.bf16.msra.mxu0 0
      %122 = vmatprep.subr.bf16.mxu0 0
      %123 = vmatpush2.bf16.msra.mxu0 0
      %124 = vmatprep.mubr.bf16.mxu0 0
      %125 = vmatmul.mubr.bf16.gmra.mxu0 %v90
      %v126 = vpop.f32.mrf.mxu0
      %v127 = vadd.f32 %v69, %v126
      %v128 = vpop.f32.mrf.mxu0
      %v129 = vpop.f32.mrf.mxu0
      %v130 = vadd.f32 %v69, %v129
      %v131 = vpop.f32.mrf.mxu0
      %132 = vdwg.mxu0
      %v133 = vtanh.pop %v127
      %v134 = vtanh.pop %v130
      %v135 = vpack.c.bf16 %v134, %v133
      %v137 = vunpack.c.l.b16 %v135
      %v138 = vunpack.c.h.b16 %v135
      %v139 = vpack.c.b16 %v137, %v137
      %v140 = vpack.c.b16 %v138, %v138
      %vm143 = vcmask 519168
      %144 = vst.msk [vmem:[#allocation2] sm:$0xf] %vm143, %v139
      %145 = vst.msk [vmem:[#allocation2 + $0x4] sm:$0xf] %vm143, %v140
    $region25: #{_lambda_.1} parent=1 // pred_fallthru
      _
    %v146 = vld [vmem:[#allocation2] sm:$0xf]
    %v147 = vld [vmem:[#allocation2 + $0x4] sm:$0xf]
    %v148 = vld [vmem:[%s45] sm:$0xf]
    %v149 = vld [vmem:[%s45 + $0x4] sm:$0xf]
    %v150 = vld [vmem:[%s45 + $0x8] sm:$0xf]
    %v151 = vld [vmem:[%s45 + $0xc] sm:$0xf]
    %v152 = vld [vmem:[%s45 + $0x10] sm:$0xf]
    %v153 = vld [vmem:[%s45 + $0x14] sm:$0xf]
    %v154 = vld [vmem:[%s45 + $0x18] sm:$0xf]
    %v155 = vld [vmem:[%s45 + $0x1c] sm:$0xf]
    %v156 = vld [vmem:[%s50] sm:$0x1]
    %v158 = vlaneseq
    %v159 = vshrl.u32 %v158, 7
    %v160 = vsub.s32 0, %v159
    %v161 = vrot.slane %v156, %v160
    %v165 = vunpack.c.l.b16 %v146
    %v166 = vunpack.c.l.b16 %v147
    %v167 = vpack.c.b16 %v166, %v165
    %v176 = vunpack.c.l.b16 %v148
    %v177 = vunpack.c.l.b16 %v149
    %v178 = vunpack.c.l.b16 %v150
    %v179 = vunpack.c.l.b16 %v151
    %v180 = vunpack.c.l.b16 %v152
    %v181 = vunpack.c.l.b16 %v153
    %v182 = vunpack.c.l.b16 %v154
    %v183 = vunpack.c.l.b16 %v155
    %v184 = vpack.c.b16 %v177, %v176
    %v185 = vpack.c.b16 %v179, %v178
    %v186 = vpack.c.b16 %v181, %v180
    %v187 = vpack.c.b16 %v183, %v182
    %vm192 = vcmask 523264
    %v194 = vsel %vm192, %v167, 0
    %196 = vmatprep.subr.bf16.mxu0 0
    %197 = vmatpush1.bf16.msra.mxu0 0
    %198 = vmatprep.subr.bf16.mxu0 0
    %199 = vmatpush1.bf16.msra.mxu0 0
    %200 = vmatprep.subr.bf16.mxu0 0
    %201 = vmatpush1.bf16.msra.mxu0 0
    %202 = vmatprep.subr.bf16.mxu0 0
    %203 = vmatpush1.bf16.msra.mxu0 0
    %204 = vmatprep.subr.bf16.mxu0 0
    %205 = vmatpush1.bf16.msra.mxu0 %v187
    %206 = vmatprep.subr.bf16.mxu0 0
    %207 = vmatpush1.bf16.msra.mxu0 %v186
    %208 = vmatprep.subr.bf16.mxu0 0
    %209 = vmatpush1.bf16.msra.mxu0 %v185
    %210 = vmatprep.subr.bf16.mxu0 0
    %211 = vmatpush1.bf16.msra.mxu0 %v184
    %212 = vmatprep.subr.bf16.mxu0 0
    %213 = vmatpush2.bf16.msra.mxu0 0
    %214 = vmatprep.subr.bf16.mxu0 0
    %215 = vmatpush2.bf16.msra.mxu0 0
    %216 = vmatprep.subr.bf16.mxu0 0
    %217 = vmatpush2.bf16.msra.mxu0 0
    %218 = vmatprep.subr.bf16.mxu0 0
    %219 = vmatpush2.bf16.msra.mxu0 0
    %220 = vmatprep.subr.bf16.mxu0 0
    %221 = vmatpush2.bf16.msra.mxu0 0
    %222 = vmatprep.subr.bf16.mxu0 0
    %223 = vmatpush2.bf16.msra.mxu0 0
    %224 = vmatprep.subr.bf16.mxu0 0
    %225 = vmatpush2.bf16.msra.mxu0 0
    %226 = vmatprep.subr.bf16.mxu0 0
    %227 = vmatpush2.bf16.msra.mxu0 0
    %228 = vmatprep.mubr.bf16.mxu0 0
    %229 = vmatmul.mubr.bf16.gmra.mxu0 %v194
    %v230 = vpop.f32.mrf.mxu0
    %v231 = vadd.f32 %v161, %v230
    %v232 = vpop.f32.mrf.mxu0
    %v233 = vpop.f32.mrf.mxu0
    %v234 = vadd.f32 %v161, %v233
    %v235 = vpop.f32.mrf.mxu0
    %236 = vdwg.mxu0
    %v237 = vpack.c.bf16 %v234, %v231
    %v239 = vunpack.c.l.b16 %v237
    %v240 = vunpack.c.h.b16 %v237
    %v241 = vpack.c.b16 %v239, %v239
    %v242 = vpack.c.b16 %v240, %v240
    %245 = vst [vmem:[#allocation3] sm:$0xf] %v241
    %246 = vst [vmem:[#allocation3 + $0x4] sm:$0xf] %v242
    // Predicated region
    $region26: #{_lambda_.1} parent=1 // pred_check
      _
    $region27: #{_lambda_.1} parent=1 // pred_check_branch
      %248 = sbr.rel (0) target = $region29
    $region28: #{_lambda_.1} parent=1 // pred_region
      %s249 = sadd.s32 0, 0
      %s251 = ssub.s32 128, 128
      %252 = vsyncadd [#allocation4], %s251
      %s253 = smul.addr %s249, 64
      %s254 = scalar_lea.hbm %s5, %s253
      %s255 = sshll.u32 [#allocation3], 4
      %s256 = int_to_ptr.vmem [resolvable:$true] %s255
      %261 = dma.vmem_to_hbm [thread:$0]  %s256, 128, %s254, [#allocation4], 64, 64, 4
    $region29: #{_lambda_.1} parent=1 // pred_fallthru
      _
    // Predicated region
    $region30: #{_lambda_.1} parent=1 // pred_check
      _
    $region31: #{_lambda_.1} parent=1 // pred_check_branch
      %263 = sbr.rel (0) target = $region33
    $region32: #{_lambda_.1} parent=1 // pred_region
      %264 = dma.done [#allocation4], 128
    $region33: #{_lambda_.1} parent=1 // pred_fallthru
      _
    %265 = vsyncpa [#allocation4], 1

</llo_original>
